<compile_context>
chip_gen: v6e
topology: v6e:2x2x1
jax: 0.10.0
libtpu: 0.0.40
codegen_flags: <defaults>
</compile_context>

<pallas_src>
import functools

import jax
import jax.numpy as jnp
from jax.experimental import pallas as pl
from jax.experimental.pallas import tpu as pltpu

_LANE = 128


def _round_up(n, m):
    return ((n + m - 1) // m) * m


def _cdiv(a, b):
    return (a + b - 1) // b


def jnet_kernel(xjx_ref,
                w1_ref, b1_ref, w2_ref, b2_ref,
                w3_ref, b3_ref, w4_ref, b4_ref,
                out_ref, h_ref):
    T = xjx_ref.shape[0] // 2   # rows [:T] = x, rows [T:] = jx

    def hidden(operand, w_ref, b_ref):
        # One MXU pass for both the activation and the Jacobian rows.
        zz = jnp.dot(operand, w_ref[...], preferred_element_type=jnp.float32)
        z = zz[:T] + b_ref[...]
        # One shared exp feeds softplus AND its derivative (sigmoid); the
        # reciprocal rides the EUP slot (approx=True -> ~free).
        e = jnp.exp(-jnp.abs(z))
        inv = pl.reciprocal(1.0 + e, approx=True)
        sig = jnp.where(z >= 0.0, inv, e * inv)          # sigmoid(z)
        sp = jnp.maximum(z, 0.0) + jnp.log1p(e)          # stable softplus(z)
        # Persistent VMEM scratch holds the bf16 operand for the next matmul.
        h_ref[0:T, :] = sp.astype(h_ref.dtype)
        h_ref[T:, :] = (zz[T:] * sig).astype(h_ref.dtype)

    hidden(xjx_ref[...], w1_ref, b1_ref)
    hidden(h_ref[...], w2_ref, b2_ref)
    hidden(h_ref[...], w3_ref, b3_ref)

    zz = jnp.dot(h_ref[...], w4_ref[...], preferred_element_type=jnp.float32)
    out_ref[0:T, :] = zz[:T] + b4_ref[...]
    out_ref[T:, :] = zz[T:]


def jnet_forward(x, jx, params, *, tile_max=2048, use_bf16=True):
    """params: dict with w1..w4 shaped (in, out) and b1..b4 shaped (1, out)."""
    B, F = x.shape
    H = params["w1"].shape[1]
    C = params["w4"].shape[1]
    H_pad = _round_up(H, _LANE)

    # >=2 grid steps (v7x megacore), even count, minimal dead padded rows.
    nb = max(2, _cdiv(B, tile_max))
    nb += nb % 2
    tile = _round_up(_cdiv(B, nb), 16)      # 16 = bf16 sublane packing
    B_pad = nb * tile
    T2 = 2 * tile

    op_dtype = jnp.bfloat16 if use_bf16 else jnp.float32

    # Pre-interleave per tile: rows [i*T2 : i*T2+tile) = x tile i,
    #                          rows [i*T2+tile : (i+1)*T2) = jx tile i.
    def stack_inputs(a, b):
        a = jnp.pad(a.astype(op_dtype), ((0, B_pad - B), (0, 0))).reshape(nb, tile, F)
        b = jnp.pad(b.astype(op_dtype), ((0, B_pad - B), (0, 0))).reshape(nb, tile, F)
        return jnp.concatenate([a, b], axis=1).reshape(nb * T2, F)

    xjx = stack_inputs(x, jx)

    def padw(a, rows, cols):
        # Padded ROWS/COLS are exactly zero (jnp.pad) -- required so padded
        # hidden lanes (softplus(0)=ln 2) never leak into the next layer.
        return jnp.pad(a.astype(op_dtype),
                       ((0, rows - a.shape[0]), (0, cols - a.shape[1])))

    def padb(a, cols):
        return jnp.pad(a.astype(jnp.float32), ((0, 0), (0, cols - a.shape[1])))

    w1 = padw(params["w1"], F, H_pad);     b1 = padb(params["b1"], H_pad)
    w2 = padw(params["w2"], H_pad, H_pad); b2 = padb(params["b2"], H_pad)
    w3 = padw(params["w3"], H_pad, H_pad); b3 = padb(params["b3"], H_pad)
    w4 = padw(params["w4"], H_pad, C);     b4 = padb(params["b4"], C)

    in_spec = pl.BlockSpec((T2, F), lambda i: (i, 0))
    out_spec = pl.BlockSpec((T2, C), lambda i: (i, 0))

    def resident(shape):
        # Same block every grid step -> weights/biases stay VMEM-resident.
        return pl.BlockSpec(shape, lambda i: (0, 0))

    # Per-tile working-set estimate: in/out double buffers + bf16 scratch +
    # ~10 f32 temporaries + weights; capped at 48 MiB (v7x has 64 MiB VMEM/TC).
    wbytes = 2 if use_bf16 else 4
    est = (2 * T2 * F * wbytes + 2 * T2 * C * 4
           + T2 * H_pad * wbytes + 10 * T2 * H_pad * 4
           + (F * H_pad + 2 * H_pad * H_pad + H_pad * C) * wbytes
           + (2 << 20))
    vmem_limit = int(min(48 << 20, max(16 << 20, est)))

    out = pl.pallas_call(
        jnet_kernel,
        grid=(nb,),
        in_specs=[in_spec,
                  resident((F, H_pad)), resident((1, H_pad)),
                  resident((H_pad, H_pad)), resident((1, H_pad)),
                  resident((H_pad, H_pad)), resident((1, H_pad)),
                  resident((H_pad, C)), resident((1, C))],
        out_specs=out_spec,
        out_shape=jax.ShapeDtypeStruct((nb * T2, C), jnp.float32),
        scratch_shapes=[pltpu.VMEM((T2, H_pad), op_dtype)],
        compiler_params=pltpu.CompilerParams(
            dimension_semantics=("parallel",),
            vmem_limit_bytes=vmem_limit),
    )(xjx, w1, b1, w2, b2, w3, b3, w4, b4)

    out = out.reshape(nb, 2, tile, C)
    out_x = out[:, 0].reshape(B_pad, C)[:B]
    out_jx = out[:, 1].reshape(B_pad, C)[:B]
    return out_x, out_jx


def make_params(key, n_features, n_classes):
    dims = [(n_features, 120), (120, 120), (120, 120), (120, n_classes)]
    params = {}
    keys = jax.random.split(key, 2 * len(dims))
    for i, (fan_in, fan_out) in enumerate(dims):
        kw, kb = keys[2 * i], keys[2 * i + 1]
        bound = 1.0 / jnp.sqrt(float(fan_in))
        # stored already transposed: (in, out) so the kernel does x @ W
        params[f"w{i+1}"] = jax.random.uniform(
            kw, (fan_in, fan_out), jnp.float32, -bound, bound)
        params[f"b{i+1}"] = jax.random.uniform(
            kb, (1, fan_out), jnp.float32, -bound, bound)
    return params


if __name__ == "__main__":
    key = jax.random.PRNGKey(0)
    k_params, k_x, k_jx = jax.random.split(key, 3)

    # Small shapes; batch deliberately NOT a tile multiple and feature/class
    # widths NOT lane multiples, to exercise padding + the multi-tile grid.
    batch, n_features, n_classes = 50, 32, 8
    params = make_params(k_params, n_features, n_classes)
    x = jax.random.normal(k_x, (batch, n_features), jnp.float32)
    jx = jax.random.normal(k_jx, (batch, n_features), jnp.float32)

    # tile_max=16 forces a 4-step parallel grid for testing; production
    # callers keep the default tile_max=2048.
    fwd = jax.jit(functools.partial(jnet_forward, tile_max=16, use_bf16=True))
    out_x, out_jx = fwd(x, jx, params)
    jax.block_until_ready((out_x, out_jx))

    # Pure-JAX f32 reference of the same math (exact sigmoid/softplus).
    def ref(x, jx, p):
        for i in (1, 2, 3):
            z = x @ p[f"w{i}"] + p[f"b{i}"]
            jx = (jx @ p[f"w{i}"]) * jax.nn.sigmoid(z)
            x = jax.nn.softplus(z)
        return x @ p["w4"] + p["b4"], jx @ p["w4"]

    rx, rjx = ref(x, jx, params)
    # Tolerance accounts for bf16 matmul operands (f32 accumulation) plus the
    # EUP approximate reciprocal compounding over 3 layers; pass
    # use_bf16=False for tighter accuracy.
    assert out_x.shape == (batch, n_classes) and out_jx.shape == (batch, n_classes)
    assert jnp.allclose(out_x, rx, atol=5e-2, rtol=5e-2)
    assert jnp.allclose(out_jx, rjx, atol=5e-2, rtol=5e-2)

    print("KERNEL_OK")
</pallas_src>

<mosaic_0001>
module attributes {stable_mosaic.version = 11 : i64} {
  func.func @jnet_kernel(%arg0: i32, %arg1: memref<32x32xbf16, #tpu.memory_space<vmem>>, %arg2: memref<32x128xbf16, #tpu.memory_space<vmem>>, %arg3: memref<1x128xf32, #tpu.memory_space<vmem>>, %arg4: memref<128x128xbf16, #tpu.memory_space<vmem>>, %arg5: memref<1x128xf32, #tpu.memory_space<vmem>>, %arg6: memref<128x128xbf16, #tpu.memory_space<vmem>>, %arg7: memref<1x128xf32, #tpu.memory_space<vmem>>, %arg8: memref<128x8xbf16, #tpu.memory_space<vmem>>, %arg9: memref<1x8xf32, #tpu.memory_space<vmem>>, %arg10: memref<32x8xf32, #tpu.memory_space<vmem>>, %arg11: memref<32x128xbf16, #tpu.memory_space<vmem>>) attributes {dimension_semantics = [#tpu.dimension_semantics<parallel>], iteration_bounds = array<i64: 4>, scalar_prefetch = 0 : i64, scratch_operands = 1 : i64, tpu.core_type = #tpu.core_type<tc>, window_params = [{transform_indices = @transform_0, window_bounds = array<i64: 32, 32>}, {pipeline_mode = #tpu.pipeline_mode<synchronous>, transform_indices = @transform_1, window_bounds = array<i64: 32, 128>}, {pipeline_mode = #tpu.pipeline_mode<synchronous>, transform_indices = @transform_2, window_bounds = array<i64: 1, 128>}, {pipeline_mode = #tpu.pipeline_mode<synchronous>, transform_indices = @transform_3, window_bounds = array<i64: 128, 128>}, {pipeline_mode = #tpu.pipeline_mode<synchronous>, transform_indices = @transform_4, window_bounds = array<i64: 1, 128>}, {pipeline_mode = #tpu.pipeline_mode<synchronous>, transform_indices = @transform_5, window_bounds = array<i64: 128, 128>}, {pipeline_mode = #tpu.pipeline_mode<synchronous>, transform_indices = @transform_6, window_bounds = array<i64: 1, 128>}, {pipeline_mode = #tpu.pipeline_mode<synchronous>, transform_indices = @transform_7, window_bounds = array<i64: 128, 8>}, {pipeline_mode = #tpu.pipeline_mode<synchronous>, transform_indices = @transform_8, window_bounds = array<i64: 1, 8>}, {transform_indices = @transform_9, window_bounds = array<i64: 32, 8>}]} {
    %c0 = arith.constant 0 : index
    %c0_0 = arith.constant 0 : index
    %0 = vector.load %arg1[%c0, %c0_0] : memref<32x32xbf16, #tpu.memory_space<vmem>>, vector<32x32xbf16>
    %c0_1 = arith.constant 0 : index
    %c0_2 = arith.constant 0 : index
    %1 = vector.load %arg2[%c0_1, %c0_2] : memref<32x128xbf16, #tpu.memory_space<vmem>>, vector<32x128xbf16>
    %cst = arith.constant dense<0.000000e+00> : vector<32x128xf32>
    %2 = tpu.matmul %0, %1, %cst {dimension_numbers = #tpu.dot_dimension_numbers<[1], [0], [0], [1], [0, 0, 1, 1], [], []>} : vector<32x32xbf16>, vector<32x128xbf16>, vector<32x128xf32> -> vector<32x128xf32>
    %3 = vector.extract_strided_slice %2 {offsets = [0, 0], sizes = [16, 128], strides = [1, 1]} : vector<32x128xf32> to vector<16x128xf32>
    %c0_3 = arith.constant 0 : index
    %c0_4 = arith.constant 0 : index
    %4 = vector.load %arg3[%c0_3, %c0_4] : memref<1x128xf32, #tpu.memory_space<vmem>>, vector<1x128xf32>
    %5 = vector.broadcast %4 : vector<1x128xf32> to vector<16x128xf32>
    %6 = arith.addf %3, %5 : vector<16x128xf32>
    %7 = math.absf %6 : vector<16x128xf32>
    %cst_5 = arith.constant 0.000000e+00 : f32
    %8 = vector.broadcast %cst_5 : f32 to vector<16x128xf32>
    %9 = arith.subf %8, %7 : vector<16x128xf32>
    %10 = math.exp %9 : vector<16x128xf32>
    %cst_6 = arith.constant 1.000000e+00 : f32
    %11 = vector.broadcast %cst_6 : f32 to vector<16x128xf32>
    %12 = arith.addf %11, %10 : vector<16x128xf32>
    %13 = tpu.reciprocal %12 {approx = true} : vector<16x128xf32> -> vector<16x128xf32>
    %cst_7 = arith.constant 0.000000e+00 : f32
    %14 = vector.broadcast %cst_7 : f32 to vector<16x128xf32>
    %15 = arith.cmpf oge, %6, %14 : vector<16x128xf32>
    %16 = arith.mulf %10, %13 : vector<16x128xf32>
    %17 = arith.select %15, %13, %16 : vector<16x128xi1>, vector<16x128xf32>
    %cst_8 = arith.constant 0.000000e+00 : f32
    %18 = vector.broadcast %cst_8 : f32 to vector<16x128xf32>
    %19 = arith.maximumf %6, %18 : vector<16x128xf32>
    %20 = math.log1p %10 : vector<16x128xf32>
    %21 = arith.addf %19, %20 : vector<16x128xf32>
    %22 = arith.truncf %21 : vector<16x128xf32> to vector<16x128xbf16>
    %c0_9 = arith.constant 0 : index
    %c0_10 = arith.constant 0 : index
    %23 = vector.load %arg11[%c0_9, %c0_10] : memref<32x128xbf16, #tpu.memory_space<vmem>>, vector<16x128xbf16>
    tpu.vector_store %arg11[%c0_9, %c0_10], %22 {strides = array<i32>} : memref<32x128xbf16, #tpu.memory_space<vmem>>, vector<16x128xbf16>,
    %24 = vector.extract_strided_slice %2 {offsets = [16, 0], sizes = [16, 128], strides = [1, 1]} : vector<32x128xf32> to vector<16x128xf32>
    %25 = arith.mulf %24, %17 : vector<16x128xf32>
    %26 = arith.truncf %25 : vector<16x128xf32> to vector<16x128xbf16>
    %c16 = arith.constant 16 : index
    %c0_11 = arith.constant 0 : index
    %27 = vector.load %arg11[%c16, %c0_11] : memref<32x128xbf16, #tpu.memory_space<vmem>>, vector<16x128xbf16>
    tpu.vector_store %arg11[%c16, %c0_11], %26 {strides = array<i32>} : memref<32x128xbf16, #tpu.memory_space<vmem>>, vector<16x128xbf16>,
    %c0_12 = arith.constant 0 : index
    %c0_13 = arith.constant 0 : index
    %28 = vector.load %arg11[%c0_12, %c0_13] : memref<32x128xbf16, #tpu.memory_space<vmem>>, vector<32x128xbf16>
    %c0_14 = arith.constant 0 : index
    %c0_15 = arith.constant 0 : index
    %29 = vector.load %arg4[%c0_14, %c0_15] : memref<128x128xbf16, #tpu.memory_space<vmem>>, vector<128x128xbf16>
    %cst_16 = arith.constant dense<0.000000e+00> : vector<32x128xf32>
    %30 = tpu.matmul %28, %29, %cst_16 {dimension_numbers = #tpu.dot_dimension_numbers<[1], [0], [0], [1], [0, 0, 1, 1], [], []>} : vector<32x128xbf16>, vector<128x128xbf16>, vector<32x128xf32> -> vector<32x128xf32>
    %31 = vector.extract_strided_slice %30 {offsets = [0, 0], sizes = [16, 128], strides = [1, 1]} : vector<32x128xf32> to vector<16x128xf32>
    %c0_17 = arith.constant 0 : index
    %c0_18 = arith.constant 0 : index
    %32 = vector.load %arg5[%c0_17, %c0_18] : memref<1x128xf32, #tpu.memory_space<vmem>>, vector<1x128xf32>
    %33 = vector.broadcast %32 : vector<1x128xf32> to vector<16x128xf32>
    %34 = arith.addf %31, %33 : vector<16x128xf32>
    %35 = math.absf %34 : vector<16x128xf32>
    %cst_19 = arith.constant 0.000000e+00 : f32
    %36 = vector.broadcast %cst_19 : f32 to vector<16x128xf32>
    %37 = arith.subf %36, %35 : vector<16x128xf32>
    %38 = math.exp %37 : vector<16x128xf32>
    %cst_20 = arith.constant 1.000000e+00 : f32
    %39 = vector.broadcast %cst_20 : f32 to vector<16x128xf32>
    %40 = arith.addf %39, %38 : vector<16x128xf32>
    %41 = tpu.reciprocal %40 {approx = true} : vector<16x128xf32> -> vector<16x128xf32>
    %cst_21 = arith.constant 0.000000e+00 : f32
    %42 = vector.broadcast %cst_21 : f32 to vector<16x128xf32>
    %43 = arith.cmpf oge, %34, %42 : vector<16x128xf32>
    %44 = arith.mulf %38, %41 : vector<16x128xf32>
    %45 = arith.select %43, %41, %44 : vector<16x128xi1>, vector<16x128xf32>
    %cst_22 = arith.constant 0.000000e+00 : f32
    %46 = vector.broadcast %cst_22 : f32 to vector<16x128xf32>
    %47 = arith.maximumf %34, %46 : vector<16x128xf32>
    %48 = math.log1p %38 : vector<16x128xf32>
    %49 = arith.addf %47, %48 : vector<16x128xf32>
    %50 = arith.truncf %49 : vector<16x128xf32> to vector<16x128xbf16>
    %c0_23 = arith.constant 0 : index
    %c0_24 = arith.constant 0 : index
    %51 = vector.load %arg11[%c0_23, %c0_24] : memref<32x128xbf16, #tpu.memory_space<vmem>>, vector<16x128xbf16>
    tpu.vector_store %arg11[%c0_23, %c0_24], %50 {strides = array<i32>} : memref<32x128xbf16, #tpu.memory_space<vmem>>, vector<16x128xbf16>,
    %52 = vector.extract_strided_slice %30 {offsets = [16, 0], sizes = [16, 128], strides = [1, 1]} : vector<32x128xf32> to vector<16x128xf32>
    %53 = arith.mulf %52, %45 : vector<16x128xf32>
    %54 = arith.truncf %53 : vector<16x128xf32> to vector<16x128xbf16>
    %c16_25 = arith.constant 16 : index
    %c0_26 = arith.constant 0 : index
    %55 = vector.load %arg11[%c16_25, %c0_26] : memref<32x128xbf16, #tpu.memory_space<vmem>>, vector<16x128xbf16>
    tpu.vector_store %arg11[%c16_25, %c0_26], %54 {strides = array<i32>} : memref<32x128xbf16, #tpu.memory_space<vmem>>, vector<16x128xbf16>,
    %c0_27 = arith.constant 0 : index
    %c0_28 = arith.constant 0 : index
    %56 = vector.load %arg11[%c0_27, %c0_28] : memref<32x128xbf16, #tpu.memory_space<vmem>>, vector<32x128xbf16>
    %c0_29 = arith.constant 0 : index
    %c0_30 = arith.constant 0 : index
    %57 = vector.load %arg6[%c0_29, %c0_30] : memref<128x128xbf16, #tpu.memory_space<vmem>>, vector<128x128xbf16>
    %cst_31 = arith.constant dense<0.000000e+00> : vector<32x128xf32>
    %58 = tpu.matmul %56, %57, %cst_31 {dimension_numbers = #tpu.dot_dimension_numbers<[1], [0], [0], [1], [0, 0, 1, 1], [], []>} : vector<32x128xbf16>, vector<128x128xbf16>, vector<32x128xf32> -> vector<32x128xf32>
    %59 = vector.extract_strided_slice %58 {offsets = [0, 0], sizes = [16, 128], strides = [1, 1]} : vector<32x128xf32> to vector<16x128xf32>
    %c0_32 = arith.constant 0 : index
    %c0_33 = arith.constant 0 : index
    %60 = vector.load %arg7[%c0_32, %c0_33] : memref<1x128xf32, #tpu.memory_space<vmem>>, vector<1x128xf32>
    %61 = vector.broadcast %60 : vector<1x128xf32> to vector<16x128xf32>
    %62 = arith.addf %59, %61 : vector<16x128xf32>
    %63 = math.absf %62 : vector<16x128xf32>
    %cst_34 = arith.constant 0.000000e+00 : f32
    %64 = vector.broadcast %cst_34 : f32 to vector<16x128xf32>
    %65 = arith.subf %64, %63 : vector<16x128xf32>
    %66 = math.exp %65 : vector<16x128xf32>
    %cst_35 = arith.constant 1.000000e+00 : f32
    %67 = vector.broadcast %cst_35 : f32 to vector<16x128xf32>
    %68 = arith.addf %67, %66 : vector<16x128xf32>
    %69 = tpu.reciprocal %68 {approx = true} : vector<16x128xf32> -> vector<16x128xf32>
    %cst_36 = arith.constant 0.000000e+00 : f32
    %70 = vector.broadcast %cst_36 : f32 to vector<16x128xf32>
    %71 = arith.cmpf oge, %62, %70 : vector<16x128xf32>
    %72 = arith.mulf %66, %69 : vector<16x128xf32>
    %73 = arith.select %71, %69, %72 : vector<16x128xi1>, vector<16x128xf32>
    %cst_37 = arith.constant 0.000000e+00 : f32
    %74 = vector.broadcast %cst_37 : f32 to vector<16x128xf32>
    %75 = arith.maximumf %62, %74 : vector<16x128xf32>
    %76 = math.log1p %66 : vector<16x128xf32>
    %77 = arith.addf %75, %76 : vector<16x128xf32>
    %78 = arith.truncf %77 : vector<16x128xf32> to vector<16x128xbf16>
    %c0_38 = arith.constant 0 : index
    %c0_39 = arith.constant 0 : index
    %79 = vector.load %arg11[%c0_38, %c0_39] : memref<32x128xbf16, #tpu.memory_space<vmem>>, vector<16x128xbf16>
    tpu.vector_store %arg11[%c0_38, %c0_39], %78 {strides = array<i32>} : memref<32x128xbf16, #tpu.memory_space<vmem>>, vector<16x128xbf16>,
    %80 = vector.extract_strided_slice %58 {offsets = [16, 0], sizes = [16, 128], strides = [1, 1]} : vector<32x128xf32> to vector<16x128xf32>
    %81 = arith.mulf %80, %73 : vector<16x128xf32>
    %82 = arith.truncf %81 : vector<16x128xf32> to vector<16x128xbf16>
    %c16_40 = arith.constant 16 : index
    %c0_41 = arith.constant 0 : index
    %83 = vector.load %arg11[%c16_40, %c0_41] : memref<32x128xbf16, #tpu.memory_space<vmem>>, vector<16x128xbf16>
    tpu.vector_store %arg11[%c16_40, %c0_41], %82 {strides = array<i32>} : memref<32x128xbf16, #tpu.memory_space<vmem>>, vector<16x128xbf16>,
    %c0_42 = arith.constant 0 : index
    %c0_43 = arith.constant 0 : index
    %84 = vector.load %arg11[%c0_42, %c0_43] : memref<32x128xbf16, #tpu.memory_space<vmem>>, vector<32x128xbf16>
    %c0_44 = arith.constant 0 : index
    %c0_45 = arith.constant 0 : index
    %85 = vector.load %arg8[%c0_44, %c0_45] : memref<128x8xbf16, #tpu.memory_space<vmem>>, vector<128x8xbf16>
    %cst_46 = arith.constant dense<0.000000e+00> : vector<32x8xf32>
    %86 = tpu.matmul %84, %85, %cst_46 {dimension_numbers = #tpu.dot_dimension_numbers<[1], [0], [0], [1], [0, 0, 1, 1], [], []>} : vector<32x128xbf16>, vector<128x8xbf16>, vector<32x8xf32> -> vector<32x8xf32>
    %87 = vector.extract_strided_slice %86 {offsets = [0, 0], sizes = [16, 8], strides = [1, 1]} : vector<32x8xf32> to vector<16x8xf32>
    %c0_47 = arith.constant 0 : index
    %c0_48 = arith.constant 0 : index
    %88 = vector.load %arg9[%c0_47, %c0_48] : memref<1x8xf32, #tpu.memory_space<vmem>>, vector<1x8xf32>
    %89 = vector.broadcast %88 : vector<1x8xf32> to vector<16x8xf32>
    %90 = arith.addf %87, %89 : vector<16x8xf32>
    %c0_49 = arith.constant 0 : index
    %c0_50 = arith.constant 0 : index
    %91 = vector.load %arg10[%c0_49, %c0_50] : memref<32x8xf32, #tpu.memory_space<vmem>>, vector<16x8xf32>
    tpu.vector_store %arg10[%c0_49, %c0_50], %90 {strides = array<i32>} : memref<32x8xf32, #tpu.memory_space<vmem>>, vector<16x8xf32>,
    %92 = vector.extract_strided_slice %86 {offsets = [16, 0], sizes = [16, 8], strides = [1, 1]} : vector<32x8xf32> to vector<16x8xf32>
    %c16_51 = arith.constant 16 : index
    %c0_52 = arith.constant 0 : index
    %93 = vector.load %arg10[%c16_51, %c0_52] : memref<32x8xf32, #tpu.memory_space<vmem>>, vector<16x8xf32>
    tpu.vector_store %arg10[%c16_51, %c0_52], %92 {strides = array<i32>} : memref<32x8xf32, #tpu.memory_space<vmem>>, vector<16x8xf32>,
    return
  }
  func.func @transform_0(%arg0: i32) -> (i32, i32) {
    %c0_i32 = arith.constant 0 : i32
    %c0_i32_0 = arith.constant 0 : i32
    return %arg0, %c0_i32 : i32, i32
  }
  func.func @transform_1(%arg0: i32) -> (i32, i32) {
    %c0_i32 = arith.constant 0 : i32
    %c0_i32_0 = arith.constant 0 : i32
    %c0_i32_1 = arith.constant 0 : i32
    return %c0_i32, %c0_i32_0 : i32, i32
  }
  func.func @transform_2(%arg0: i32) -> (i32, i32) {
    %c0_i32 = arith.constant 0 : i32
    %c0_i32_0 = arith.constant 0 : i32
    %c0_i32_1 = arith.constant 0 : i32
    return %c0_i32, %c0_i32_0 : i32, i32
  }
  func.func @transform_3(%arg0: i32) -> (i32, i32) {
    %c0_i32 = arith.constant 0 : i32
    %c0_i32_0 = arith.constant 0 : i32
    %c0_i32_1 = arith.constant 0 : i32
    return %c0_i32, %c0_i32_0 : i32, i32
  }
  func.func @transform_4(%arg0: i32) -> (i32, i32) {
    %c0_i32 = arith.constant 0 : i32
    %c0_i32_0 = arith.constant 0 : i32
    %c0_i32_1 = arith.constant 0 : i32
    return %c0_i32, %c0_i32_0 : i32, i32
  }
  func.func @transform_5(%arg0: i32) -> (i32, i32) {
    %c0_i32 = arith.constant 0 : i32
    %c0_i32_0 = arith.constant 0 : i32
    %c0_i32_1 = arith.constant 0 : i32
    return %c0_i32, %c0_i32_0 : i32, i32
  }
  func.func @transform_6(%arg0: i32) -> (i32, i32) {
    %c0_i32 = arith.constant 0 : i32
    %c0_i32_0 = arith.constant 0 : i32
    %c0_i32_1 = arith.constant 0 : i32
    return %c0_i32, %c0_i32_0 : i32, i32
  }
  func.func @transform_7(%arg0: i32) -> (i32, i32) {
    %c0_i32 = arith.constant 0 : i32
    %c0_i32_0 = arith.constant 0 : i32
    %c0_i32_1 = arith.constant 0 : i32
    return %c0_i32, %c0_i32_0 : i32, i32
  }
  func.func @transform_8(%arg0: i32) -> (i32, i32) {
    %c0_i32 = arith.constant 0 : i32
    %c0_i32_0 = arith.constant 0 : i32
    %c0_i32_1 = arith.constant 0 : i32
    return %c0_i32, %c0_i32_0 : i32, i32
  }
  func.func @transform_9(%arg0: i32) -> (i32, i32) {
    %c0_i32 = arith.constant 0 : i32
    %c0_i32_0 = arith.constant 0 : i32
    return %arg0, %c0_i32 : i32, i32
  }
}

</mosaic_0001>

<llo_original>
// kernel: jnet_forward.1
$region0: #{jnet_forward.1}
  #allocation0 [shape = 'u32[]', space=smem, size = 0x4, offset = 0x4, fixed_abs, tag = 'smem constant byte address 0x4 - core index']
  #allocation1 [shape = 'u32[144,128]{1,0:T(1,128)}', space=vmem, size = 0x12000, scoped, tag = 'internal scratch']
  #allocation2 [shape = 'bf16[32,128]{1,0:T(8,128)(2,1)}', space=vmem, size = 0x2000, scoped, tag = 'scratch operand']
  %s0 = inlined_call_operand.vmem [shape: bf16[128,32], index: 0, kind: input, shape index: {}]
  %s1 = inlined_call_operand.vmem [shape: bf16[32,128], index: 1, kind: input, shape index: {}]
  %s2 = inlined_call_operand.vmem [shape: f32[1,128], index: 2, kind: input, shape index: {}]
  %s3 = inlined_call_operand.vmem [shape: bf16[128,128], index: 3, kind: input, shape index: {}]
  %s4 = inlined_call_operand.vmem [shape: f32[1,128], index: 4, kind: input, shape index: {}]
  %s5 = inlined_call_operand.vmem [shape: bf16[128,128], index: 5, kind: input, shape index: {}]
  %s6 = inlined_call_operand.vmem [shape: f32[1,128], index: 6, kind: input, shape index: {}]
  %s7 = inlined_call_operand.vmem [shape: bf16[128,8], index: 7, kind: input, shape index: {}]
  %s8 = inlined_call_operand.vmem [shape: f32[1,8], index: 8, kind: input, shape index: {}]
  %s9 = inlined_call_operand.vmem [shape: f32[128,8], index: 9, kind: output, shape index: {}]
  %s10 = sld [smem:[#allocation0]]
  $region69: #{jnet_forward.1} parent=0
    _
  %s12 = ssub.s32 1, %s10
  %s13 = scalar_select 0, %s12, %s10
  loop: start=0, step=1, limit=6
  $region2: #{jnet_forward.1} parent=0 // loop_pre_header
    _
  $region3: #{jnet_forward.1} parent=0 // loop_header
    %s15 = sphi 0, %s19
    %p16 = scmp.ge.s32.totalorder %s15, 6
    %s25 = sphi 0, %s27
    %s28 = sphi 0, %s25
    %s29 = sphi 0, %s28
    %s45 = sphi 0, %s29
    %s49 = sphi 0, %s49
    %s51 = sphi 0, %s49
    %s52 = sphi 0, %s51
    %s66 = sphi 0, %s52
    %s70 = sphi 0, %s70
    %s72 = sphi 0, %s70
    %s73 = sphi 0, %s72
    %s87 = sphi 0, %s73
    %s91 = sphi 0, %s91
    %s93 = sphi 0, %s91
    %s94 = sphi 0, %s93
    %s108 = sphi 0, %s94
    %s112 = sphi 0, %s112
    %s114 = sphi 0, %s112
    %s115 = sphi 0, %s114
    %s129 = sphi 0, %s115
    %s133 = sphi 0, %s133
    %s135 = sphi 0, %s133
    %s136 = sphi 0, %s135
    %s150 = sphi 0, %s136
    %s154 = sphi 0, %s154
    %s156 = sphi 0, %s154
    %s157 = sphi 0, %s156
    %s171 = sphi 0, %s157
    %s175 = sphi 0, %s175
    %s177 = sphi 0, %s175
    %s178 = sphi 0, %s177
    %s192 = sphi 0, %s178
    %s196 = sphi 0, %s196
    %s198 = sphi 0, %s196
    %s199 = sphi 0, %s198
    %s213 = sphi 0, %s199
    %s219 = sphi 0, %s221
    %s222 = sphi 0, %s219
    %s223 = sphi 0, %s222
    %s239 = sphi 0, %s223
  $region4: #{jnet_forward.1} parent=0 // loop_header_branch
    %18 = sbr.rel (%p16) target = $region8
  $region5: #{jnet_forward.1} parent=0 // loop_body
    %s20 = ssub.s32 %s15, 1
    %s21 = ssub.s32 %s15, 2
    %s22 = sadd.s32 %s15, 1
    %s23 = ssub.s32 %s15, %s22
    %p24 = scmp.eq.s32.totalorder %s23, 0
    %s26 = sadd.s32 %s25, 1
    %s27 = scalar_select %p24, %s25, %s26
    %p30 = pneg %p24
    %p31 = scmp.eq.s32.totalorder %s15, 3
    %p32 = por %p30, %p31
    %p33 = scmp.ne.s32.totalorder %s25, %s28
    %p34 = scmp.eq.s32.totalorder %s15, 0
    %p35 = por %p33, %p34
    %p36 = scmp.ne.s32.totalorder %s25, %s28
    %p37 = scmp.eq.s32.totalorder %s20, 3
    %p38 = por %p36, %p37
    %p39 = scmp.ne.s32.totalorder %s28, %s29
    %p40 = scmp.eq.s32.totalorder %s20, 0
    %p41 = por %p39, %p40
    %p42 = scmp.ne.s32.totalorder %s28, %s29
    %p43 = scmp.eq.s32.totalorder %s21, 3
    %p44 = por %p42, %p43
    %p46 = scmp.ne.s32.totalorder %s29, %s45
    %p47 = scmp.eq.s32.totalorder %s21, 0
    %p48 = por %p46, %p47
    %s50 = sadd.s32 %s49, 1
    %p53 = scmp.eq.s32.totalorder %s15, 3
    %p54 = scmp.ne.s32.totalorder %s49, %s51
    %p55 = scmp.eq.s32.totalorder %s15, 0
    %p56 = por %p54, %p55
    %p57 = scmp.ne.s32.totalorder %s49, %s51
    %p58 = scmp.eq.s32.totalorder %s20, 3
    %p59 = por %p57, %p58
    %p60 = scmp.ne.s32.totalorder %s51, %s52
    %p61 = scmp.eq.s32.totalorder %s20, 0
    %p62 = por %p60, %p61
    %p63 = scmp.ne.s32.totalorder %s51, %s52
    %p64 = scmp.eq.s32.totalorder %s21, 3
    %p65 = por %p63, %p64
    %p67 = scmp.ne.s32.totalorder %s52, %s66
    %p68 = scmp.eq.s32.totalorder %s21, 0
    %p69 = por %p67, %p68
    %s71 = sadd.s32 %s70, 1
    %p74 = scmp.eq.s32.totalorder %s15, 3
    %p75 = scmp.ne.s32.totalorder %s70, %s72
    %p76 = scmp.eq.s32.totalorder %s15, 0
    %p77 = por %p75, %p76
    %p78 = scmp.ne.s32.totalorder %s70, %s72
    %p79 = scmp.eq.s32.totalorder %s20, 3
    %p80 = por %p78, %p79
    %p81 = scmp.ne.s32.totalorder %s72, %s73
    %p82 = scmp.eq.s32.totalorder %s20, 0
    %p83 = por %p81, %p82
    %p84 = scmp.ne.s32.totalorder %s72, %s73
    %p85 = scmp.eq.s32.totalorder %s21, 3
    %p86 = por %p84, %p85
    %p88 = scmp.ne.s32.totalorder %s73, %s87
    %p89 = scmp.eq.s32.totalorder %s21, 0
    %p90 = por %p88, %p89
    %s92 = sadd.s32 %s91, 1
    %p95 = scmp.eq.s32.totalorder %s15, 3
    %p96 = scmp.ne.s32.totalorder %s91, %s93
    %p97 = scmp.eq.s32.totalorder %s15, 0
    %p98 = por %p96, %p97
    %p99 = scmp.ne.s32.totalorder %s91, %s93
    %p100 = scmp.eq.s32.totalorder %s20, 3
    %p101 = por %p99, %p100
    %p102 = scmp.ne.s32.totalorder %s93, %s94
    %p103 = scmp.eq.s32.totalorder %s20, 0
    %p104 = por %p102, %p103
    %p105 = scmp.ne.s32.totalorder %s93, %s94
    %p106 = scmp.eq.s32.totalorder %s21, 3
    %p107 = por %p105, %p106
    %p109 = scmp.ne.s32.totalorder %s94, %s108
    %p110 = scmp.eq.s32.totalorder %s21, 0
    %p111 = por %p109, %p110
    %s113 = sadd.s32 %s112, 1
    %p116 = scmp.eq.s32.totalorder %s15, 3
    %p117 = scmp.ne.s32.totalorder %s112, %s114
    %p118 = scmp.eq.s32.totalorder %s15, 0
    %p119 = por %p117, %p118
    %p120 = scmp.ne.s32.totalorder %s112, %s114
    %p121 = scmp.eq.s32.totalorder %s20, 3
    %p122 = por %p120, %p121
    %p123 = scmp.ne.s32.totalorder %s114, %s115
    %p124 = scmp.eq.s32.totalorder %s20, 0
    %p125 = por %p123, %p124
    %p126 = scmp.ne.s32.totalorder %s114, %s115
    %p127 = scmp.eq.s32.totalorder %s21, 3
    %p128 = por %p126, %p127
    %p130 = scmp.ne.s32.totalorder %s115, %s129
    %p131 = scmp.eq.s32.totalorder %s21, 0
    %p132 = por %p130, %p131
    %s134 = sadd.s32 %s133, 1
    %p137 = scmp.eq.s32.totalorder %s15, 3
    %p138 = scmp.ne.s32.totalorder %s133, %s135
    %p139 = scmp.eq.s32.totalorder %s15, 0
    %p140 = por %p138, %p139
    %p141 = scmp.ne.s32.totalorder %s133, %s135
    %p142 = scmp.eq.s32.totalorder %s20, 3
    %p143 = por %p141, %p142
    %p144 = scmp.ne.s32.totalorder %s135, %s136
    %p145 = scmp.eq.s32.totalorder %s20, 0
    %p146 = por %p144, %p145
    %p147 = scmp.ne.s32.totalorder %s135, %s136
    %p148 = scmp.eq.s32.totalorder %s21, 3
    %p149 = por %p147, %p148
    %p151 = scmp.ne.s32.totalorder %s136, %s150
    %p152 = scmp.eq.s32.totalorder %s21, 0
    %p153 = por %p151, %p152
    %s155 = sadd.s32 %s154, 1
    %p158 = scmp.eq.s32.totalorder %s15, 3
    %p159 = scmp.ne.s32.totalorder %s154, %s156
    %p160 = scmp.eq.s32.totalorder %s15, 0
    %p161 = por %p159, %p160
    %p162 = scmp.ne.s32.totalorder %s154, %s156
    %p163 = scmp.eq.s32.totalorder %s20, 3
    %p164 = por %p162, %p163
    %p165 = scmp.ne.s32.totalorder %s156, %s157
    %p166 = scmp.eq.s32.totalorder %s20, 0
    %p167 = por %p165, %p166
    %p168 = scmp.ne.s32.totalorder %s156, %s157
    %p169 = scmp.eq.s32.totalorder %s21, 3
    %p170 = por %p168, %p169
    %p172 = scmp.ne.s32.totalorder %s157, %s171
    %p173 = scmp.eq.s32.totalorder %s21, 0
    %p174 = por %p172, %p173
    %s176 = sadd.s32 %s175, 1
    %p179 = scmp.eq.s32.totalorder %s15, 3
    %p180 = scmp.ne.s32.totalorder %s175, %s177
    %p181 = scmp.eq.s32.totalorder %s15, 0
    %p182 = por %p180, %p181
    %p183 = scmp.ne.s32.totalorder %s175, %s177
    %p184 = scmp.eq.s32.totalorder %s20, 3
    %p185 = por %p183, %p184
    %p186 = scmp.ne.s32.totalorder %s177, %s178
    %p187 = scmp.eq.s32.totalorder %s20, 0
    %p188 = por %p186, %p187
    %p189 = scmp.ne.s32.totalorder %s177, %s178
    %p190 = scmp.eq.s32.totalorder %s21, 3
    %p191 = por %p189, %p190
    %p193 = scmp.ne.s32.totalorder %s178, %s192
    %p194 = scmp.eq.s32.totalorder %s21, 0
    %p195 = por %p193, %p194
    %s197 = sadd.s32 %s196, 1
    %p200 = scmp.eq.s32.totalorder %s15, 3
    %p201 = scmp.ne.s32.totalorder %s196, %s198
    %p202 = scmp.eq.s32.totalorder %s15, 0
    %p203 = por %p201, %p202
    %p204 = scmp.ne.s32.totalorder %s196, %s198
    %p205 = scmp.eq.s32.totalorder %s20, 3
    %p206 = por %p204, %p205
    %p207 = scmp.ne.s32.totalorder %s198, %s199
    %p208 = scmp.eq.s32.totalorder %s20, 0
    %p209 = por %p207, %p208
    %p210 = scmp.ne.s32.totalorder %s198, %s199
    %p211 = scmp.eq.s32.totalorder %s21, 3
    %p212 = por %p210, %p211
    %p214 = scmp.ne.s32.totalorder %s199, %s213
    %p215 = scmp.eq.s32.totalorder %s21, 0
    %p216 = por %p214, %p215
    %s217 = ssub.s32 %s15, %s22
    %p218 = scmp.eq.s32.totalorder %s217, 0
    %s220 = sadd.s32 %s219, 1
    %s221 = scalar_select %p218, %s219, %s220
    %p224 = pneg %p218
    %p225 = scmp.eq.s32.totalorder %s15, 3
    %p226 = por %p224, %p225
    %p227 = scmp.ne.s32.totalorder %s219, %s222
    %p228 = scmp.eq.s32.totalorder %s15, 0
    %p229 = por %p227, %p228
    %p230 = scmp.ne.s32.totalorder %s219, %s222
    %p231 = scmp.eq.s32.totalorder %s20, 3
    %p232 = por %p230, %p231
    %p233 = scmp.ne.s32.totalorder %s222, %s223
    %p234 = scmp.eq.s32.totalorder %s20, 0
    %p235 = por %p233, %p234
    %p236 = scmp.ne.s32.totalorder %s222, %s223
    %p237 = scmp.eq.s32.totalorder %s21, 3
    %p238 = por %p236, %p237
    %p240 = scmp.ne.s32.totalorder %s223, %s239
    %p241 = scmp.eq.s32.totalorder %s21, 0
    %p242 = por %p240, %p241
    %p243 = scmp.le.s32.totalorder 1, %s15
    %p244 = scmp.lt.s32.totalorder %s15, 5
    %p245 = pnand %p243, %p244
    %p246 = pneg %p245
    // Predicated region
    $region9: #{jnet_forward.1} parent=5 // pred_check
      _
    $region10: #{jnet_forward.1} parent=5 // pred_check_branch
      %248 = sbr.rel (%p245) target = $region12
    $region11: #{jnet_forward.1} parent=5 // pred_region
      %s249 = ssub.s32 %s15, 1
      // Predicated region
      $region13: #{jnet_forward.1} parent=11 // pred_check
        %p250 = pneg %p62
      $region14: #{jnet_forward.1} parent=11 // pred_check_branch
        %252 = sbr.rel (%p250) target = $region16
      $region15: #{jnet_forward.1} parent=11 // pred_region
        _
      $region16: #{jnet_forward.1} parent=11 // pred_fallthru
        _
      // Predicated region
      $region17: #{jnet_forward.1} parent=11 // pred_check
        %p253 = pneg %p83
      $region18: #{jnet_forward.1} parent=11 // pred_check_branch
        %255 = sbr.rel (%p253) target = $region20
      $region19: #{jnet_forward.1} parent=11 // pred_region
        _
      $region20: #{jnet_forward.1} parent=11 // pred_fallthru
        _
      // Predicated region
      $region21: #{jnet_forward.1} parent=11 // pred_check
        %p256 = pneg %p104
      $region22: #{jnet_forward.1} parent=11 // pred_check_branch
        %258 = sbr.rel (%p256) target = $region24
      $region23: #{jnet_forward.1} parent=11 // pred_region
        _
      $region24: #{jnet_forward.1} parent=11 // pred_fallthru
        _
      // Predicated region
      $region25: #{jnet_forward.1} parent=11 // pred_check
        %p259 = pneg %p125
      $region26: #{jnet_forward.1} parent=11 // pred_check_branch
        %261 = sbr.rel (%p259) target = $region28
      $region27: #{jnet_forward.1} parent=11 // pred_region
        _
      $region28: #{jnet_forward.1} parent=11 // pred_fallthru
        _
      // Predicated region
      $region29: #{jnet_forward.1} parent=11 // pred_check
        %p262 = pneg %p146
      $region30: #{jnet_forward.1} parent=11 // pred_check_branch
        %264 = sbr.rel (%p262) target = $region32
      $region31: #{jnet_forward.1} parent=11 // pred_region
        _
      $region32: #{jnet_forward.1} parent=11 // pred_fallthru
        _
      // Predicated region
      $region33: #{jnet_forward.1} parent=11 // pred_check
        %p265 = pneg %p167
      $region34: #{jnet_forward.1} parent=11 // pred_check_branch
        %267 = sbr.rel (%p265) target = $region36
      $region35: #{jnet_forward.1} parent=11 // pred_region
        _
      $region36: #{jnet_forward.1} parent=11 // pred_fallthru
        _
      // Predicated region
      $region37: #{jnet_forward.1} parent=11 // pred_check
        %p268 = pneg %p188
      $region38: #{jnet_forward.1} parent=11 // pred_check_branch
        %270 = sbr.rel (%p268) target = $region40
      $region39: #{jnet_forward.1} parent=11 // pred_region
        _
      $region40: #{jnet_forward.1} parent=11 // pred_fallthru
        _
      // Predicated region
      $region41: #{jnet_forward.1} parent=11 // pred_check
        %p271 = pneg %p209
      $region42: #{jnet_forward.1} parent=11 // pred_check_branch
        %273 = sbr.rel (%p271) target = $region44
      $region43: #{jnet_forward.1} parent=11 // pred_region
        _
      $region44: #{jnet_forward.1} parent=11 // pred_fallthru
        _
    $region12: #{jnet_forward.1} parent=5 // pred_fallthru
      _
    %p274 = scmp.lt.s32.totalorder %s15, 4
    // Predicated region
    $region45: #{jnet_forward.1} parent=5 // pred_check
      %p275 = pneg %p274
    $region46: #{jnet_forward.1} parent=5 // pred_check_branch
      %277 = sbr.rel (%p275) target = $region48
    $region47: #{jnet_forward.1} parent=5 // pred_region
      // Predicated region
      $region49: #{jnet_forward.1} parent=47 // pred_check
        %p278 = pneg %p35
      $region50: #{jnet_forward.1} parent=47 // pred_check_branch
        %280 = sbr.rel (%p278) target = $region52
      $region51: #{jnet_forward.1} parent=47 // pred_region
        %s281 = smul.u32 4, %s15
        %p282 = scmp.lt.s32.totalorder %s281, 15
        %s283 = scalar_select %p282, %s281, 15
        %s284 = smul.addr %s283, 4
        %s285 = scalar_lea.vmem %s0, %s284
        %s286 = smul.u32 4, %s15
      $region52: #{jnet_forward.1} parent=47 // pred_fallthru
        _
    $region48: #{jnet_forward.1} parent=5 // pred_fallthru
      _
    %p287 = scmp.le.s32.totalorder 1, %s15
    %p288 = scmp.lt.s32.totalorder %s15, 5
    %p289 = pnand %p287, %p288
    %p290 = pneg %p289
    // Predicated region
    $region53: #{jnet_forward.1} parent=5 // pred_check
      _
    $region54: #{jnet_forward.1} parent=5 // pred_check_branch
      %292 = sbr.rel (%p289) target = $region56
    $region55: #{jnet_forward.1} parent=5 // pred_region
      %s293 = ssub.s32 %s15, 1
      %s294 = smul.u32 4, %s20
      %p295 = scmp.lt.s32.totalorder %s294, 15
      %s296 = scalar_select %p295, %s294, 15
      %s297 = smul.addr %s296, 4
      %s298 = scalar_lea.vmem %s0, %s297
      %p299 = pneg %p41
      %p300 = pneg %p38
      %p301 = pneg %p62
      %p302 = pneg %p59
      %p303 = pneg %p83
      %p304 = pneg %p80
      %p305 = pneg %p104
      %p306 = pneg %p101
      %p307 = pneg %p125
      %p308 = pneg %p122
      %p309 = pneg %p146
      %p310 = pneg %p143
      %p311 = pneg %p167
      %p312 = pneg %p164
      %p313 = pneg %p188
      %p314 = pneg %p185
      %p315 = pneg %p209
      %p316 = pneg %p206
      %p317 = pneg %p235
      %p318 = pneg %p232
      %s319 = smul.u32 4, %s20
      %p320 = scmp.lt.s32.totalorder %s319, 15
      %s321 = scalar_select %p320, %s319, 15
      %s322 = smul.addr %s321, 8
      %s323 = scalar_lea.vmem %s9, %s322
      %s324 = smul.u32 4, %s20
      %p325 = scmp.lt.s32.totalorder %s324, 15
      %s326 = scalar_select %p325, %s324, 15
      %s327 = smul.addr %s326, 4
      %s328 = scalar_lea.vmem %s0, %s327
      %s329 = smul.u32 4, %s20
      %s330 = smul.u32 4, %s20
      %p331 = scmp.lt.s32.totalorder %s330, 15
      %s332 = scalar_select %p331, %s330, 15
      %s333 = smul.addr %s332, 8
      %s334 = scalar_lea.vmem %s9, %s333
      %s335 = smul.u32 4, %s20
      %v337 = vld [vmem:[%s328] sm:$0xf]
      %v338 = vld [vmem:[%s328 + $0x4] sm:$0xf]
      %v339 = vld [vmem:[%s328 + $0x8] sm:$0xf]
      %v340 = vld [vmem:[%s328 + $0xc] sm:$0xf]
      %v341 = vld [vmem:[%s1] sm:$0xf]
      %v342 = vld [vmem:[%s1 + $0x4] sm:$0xf]
      %v343 = vld [vmem:[%s1 + $0x8] sm:$0xf]
      %v344 = vld [vmem:[%s1 + $0xc] sm:$0xf]
      %v349 = vunpack.c.l.b16 %v337
      %v350 = vunpack.c.l.b16 %v338
      %v351 = vunpack.c.l.b16 %v339
      %v352 = vunpack.c.l.b16 %v340
      %v353 = vpack.c.b16 %v350, %v349
      %v354 = vpack.c.b16 %v352, %v351
      %v359 = vunpack.c.l.b16 %v341
      %v360 = vunpack.c.l.b16 %v342
      %v361 = vunpack.c.l.b16 %v343
      %v362 = vunpack.c.l.b16 %v344
      %v363 = vpack.c.b16 %v360, %v359
      %v364 = vpack.c.b16 %v362, %v361
      %vm367 = vcmask 261120
      %v369 = vsel %vm367, %v353, 0
      %v372 = vsel %vm367, %v354, 0
      %374 = vmatprep.subr.bf16.mxu0 0
      %375 = vmatpush1.bf16.msra.mxu0 0
      %376 = vmatprep.subr.bf16.mxu0 0
      %377 = vmatpush1.bf16.msra.mxu0 0
      %378 = vmatprep.subr.bf16.mxu0 0
      %379 = vmatpush1.bf16.msra.mxu0 0
      %380 = vmatprep.subr.bf16.mxu0 0
      %381 = vmatpush1.bf16.msra.mxu0 0
      %382 = vmatprep.subr.bf16.mxu0 0
      %383 = vmatpush1.bf16.msra.mxu0 0
      %384 = vmatprep.subr.bf16.mxu0 0
      %385 = vmatpush1.bf16.msra.mxu0 0
      %386 = vmatprep.subr.bf16.mxu0 0
      %387 = vmatpush1.bf16.msra.mxu0 %v364
      %388 = vmatprep.subr.bf16.mxu0 0
      %389 = vmatpush1.bf16.msra.mxu0 %v363
      %390 = vmatprep.subr.bf16.mxu0 0
      %391 = vmatpush2.bf16.msra.mxu0 0
      %392 = vmatprep.subr.bf16.mxu0 0
      %393 = vmatpush2.bf16.msra.mxu0 0
      %394 = vmatprep.subr.bf16.mxu0 0
      %395 = vmatpush2.bf16.msra.mxu0 0
      %396 = vmatprep.subr.bf16.mxu0 0
      %397 = vmatpush2.bf16.msra.mxu0 0
      %398 = vmatprep.subr.bf16.mxu0 0
      %399 = vmatpush2.bf16.msra.mxu0 0
      %400 = vmatprep.subr.bf16.mxu0 0
      %401 = vmatpush2.bf16.msra.mxu0 0
      %402 = vmatprep.subr.bf16.mxu0 0
      %403 = vmatpush2.bf16.msra.mxu0 0
      %404 = vmatprep.subr.bf16.mxu0 0
      %405 = vmatpush2.bf16.msra.mxu0 0
      %406 = vmatprep.mubr.bf16.mxu0 0
      %407 = vmatmul.mubr.bf16.gmra.mxu0 %v369
      %v408 = vpop.f32.mrf.mxu0
      %v409 = vadd.f32 0.0, %v408
      %v410 = vpop.f32.mrf.mxu0
      %v411 = vpop.f32.mrf.mxu0
      %v412 = vadd.f32 0.0, %v411
      %v413 = vpop.f32.mrf.mxu0
      %414 = vmatprep.mubr.bf16.mxu0 0
      %415 = vmatmul.mubr.bf16.gmra.mxu0 %v372
      %v416 = vpop.f32.mrf.mxu0
      %v417 = vadd.f32 0.0, %v416
      %v418 = vpop.f32.mrf.mxu0
      %v419 = vpop.f32.mrf.mxu0
      %v420 = vadd.f32 0.0, %v419
      %v421 = vpop.f32.mrf.mxu0
      %422 = vdwg.mxu0
      %v423 = vld [vmem:[%s2] sm:$0x1]
      %v425 = vlaneseq
      %v426 = vshrl.u32 %v425, 7
      %v427 = vsub.s32 0, %v426
      %v428 = vrot.slane %v423, %v427
      %v430 = vadd.f32 %v409, %v428
      %v431 = vadd.f32 %v412, %v428
      %v432 = vand.u32 2147483647, %v430
      %v433 = vand.u32 2147483647, %v431
      %v434 = vsub.f32 0.0, %v432
      %v435 = vsub.f32 0.0, %v433
      %v436 = vmul.f32 %v434, 1.442695
      %v437 = vpow.pop %v436
      %v438 = vmul.f32 %v435, 1.442695
      %v439 = vpow.pop %v438
      %v440 = vadd.f32 %v437, 1.0
      %v441 = vadd.f32 %v439, 1.0
      %v442 = vrcp.pop %v440
      %v443 = vrcp.pop %v441
      %vm444 = vcmp.ge.f32.partialorder %v430, 0.0
      %vm445 = vcmp.ge.f32.partialorder %v431, 0.0
      %v446 = vmul.f32 %v437, %v442
      %v447 = vmul.f32 %v439, %v443
      %v448 = vsel %vm444, %v442, %v446
      %v449 = vsel %vm445, %v443, %v447
      %v450 = vmax.f32 %v430, 0.0
      %v451 = vmax.f32 %v431, 0.0
      %v452 = vadd.f32 %v437, 1.0
      %v453 = vlog2.pop %v452
      %v454 = vmul.f32 %v453, 0.6931472
      %v455 = vmul.f32 -0.5, %v437
      %v456 = vadd.f32 %v455, 1.0
      %v457 = vmul.f32 %v456, %v437
      %v458 = vand.u32 2147483647, %v437
      %vm459 = vcmp.lt.f32.partialorder %v458, 0.0004427343
      %v460 = vsel %vm459, %v457, %v454
      %v461 = vadd.f32 %v439, 1.0
      %v462 = vlog2.pop %v461
      %v463 = vmul.f32 %v462, 0.6931472
      %v464 = vmul.f32 -0.5, %v439
      %v465 = vadd.f32 %v464, 1.0
      %v466 = vmul.f32 %v465, %v439
      %v467 = vand.u32 2147483647, %v439
      %vm468 = vcmp.lt.f32.partialorder %v467, 0.0004427343
      %v469 = vsel %vm468, %v466, %v463
      %v470 = vadd.f32 %v450, %v460
      %v471 = vadd.f32 %v451, %v469
      %v472 = vpack.c.bf16 %v471, %v470
      %v474 = vunpack.c.l.b16 %v472
      %v475 = vunpack.c.h.b16 %v472
      %v476 = vpack.c.b16 %v474, %v474
      %v477 = vpack.c.b16 %v475, %v475
      %480 = vst [vmem:[#allocation2] sm:$0xf] %v476
      %481 = vst [vmem:[#allocation2 + $0x4] sm:$0xf] %v477
      %v482 = vmul.f32 %v417, %v448
      %v483 = vmul.f32 %v420, %v449
      %v484 = vpack.c.bf16 %v483, %v482
      %v486 = vunpack.c.l.b16 %v484
      %v487 = vunpack.c.h.b16 %v484
      %v488 = vpack.c.b16 %v486, %v486
      %v489 = vpack.c.b16 %v487, %v487
      %492 = vst [vmem:[#allocation2 + $0x8] sm:$0xf] %v488
      %493 = vst [vmem:[#allocation2 + $0xc] sm:$0xf] %v489
      %v494 = vld [vmem:[#allocation2] sm:$0xf]
      %v495 = vld [vmem:[#allocation2 + $0x4] sm:$0xf]
      %v496 = vld [vmem:[#allocation2 + $0x8] sm:$0xf]
      %v497 = vld [vmem:[#allocation2 + $0xc] sm:$0xf]
      %v498 = vld [vmem:[%s3] sm:$0xf]
      %v499 = vld [vmem:[%s3 + $0x4] sm:$0xf]
      %v500 = vld [vmem:[%s3 + $0x8] sm:$0xf]
      %v501 = vld [vmem:[%s3 + $0xc] sm:$0xf]
      %v502 = vld [vmem:[%s3 + $0x10] sm:$0xf]
      %v503 = vld [vmem:[%s3 + $0x14] sm:$0xf]
      %v504 = vld [vmem:[%s3 + $0x18] sm:$0xf]
      %v505 = vld [vmem:[%s3 + $0x1c] sm:$0xf]
      %v506 = vld [vmem:[%s3 + $0x20] sm:$0xf]
      %v507 = vld [vmem:[%s3 + $0x24] sm:$0xf]
      %v508 = vld [vmem:[%s3 + $0x28] sm:$0xf]
      %v509 = vld [vmem:[%s3 + $0x2c] sm:$0xf]
      %v510 = vld [vmem:[%s3 + $0x30] sm:$0xf]
      %v511 = vld [vmem:[%s3 + $0x34] sm:$0xf]
      %v512 = vld [vmem:[%s3 + $0x38] sm:$0xf]
      %v513 = vld [vmem:[%s3 + $0x3c] sm:$0xf]
      %v518 = vunpack.c.l.b16 %v494
      %v519 = vunpack.c.l.b16 %v495
      %v520 = vunpack.c.l.b16 %v496
      %v521 = vunpack.c.l.b16 %v497
      %v522 = vpack.c.b16 %v519, %v518
      %v523 = vpack.c.b16 %v521, %v520
      %v542 = vunpack.c.l.b16 %v498
      %v543 = vunpack.c.l.b16 %v499
      %v544 = vunpack.c.l.b16 %v500
      %v545 = vunpack.c.l.b16 %v501
      %v546 = vunpack.c.l.b16 %v502
      %v547 = vunpack.c.l.b16 %v503
      %v548 = vunpack.c.l.b16 %v504
      %v549 = vunpack.c.l.b16 %v505
      %v550 = vunpack.c.l.b16 %v506
      %v551 = vunpack.c.l.b16 %v507
      %v552 = vunpack.c.l.b16 %v508
      %v553 = vunpack.c.l.b16 %v509
      %v554 = vunpack.c.l.b16 %v510
      %v555 = vunpack.c.l.b16 %v511
      %v556 = vunpack.c.l.b16 %v512
      %v557 = vunpack.c.l.b16 %v513
      %v558 = vpack.c.b16 %v543, %v542
      %v559 = vpack.c.b16 %v545, %v544
      %v560 = vpack.c.b16 %v547, %v546
      %v561 = vpack.c.b16 %v549, %v548
      %v562 = vpack.c.b16 %v551, %v550
      %v563 = vpack.c.b16 %v553, %v552
      %v564 = vpack.c.b16 %v555, %v554
      %v565 = vpack.c.b16 %v557, %v556
      %574 = vmatprep.subr.bf16.mxu0 0
      %575 = vmatpush1.bf16.msra.mxu0 %v565
      %576 = vmatprep.subr.bf16.mxu0 0
      %577 = vmatpush1.bf16.msra.mxu0 %v564
      %578 = vmatprep.subr.bf16.mxu0 0
      %579 = vmatpush1.bf16.msra.mxu0 %v563
      %580 = vmatprep.subr.bf16.mxu0 0
      %581 = vmatpush1.bf16.msra.mxu0 %v562
      %582 = vmatprep.subr.bf16.mxu0 0
      %583 = vmatpush1.bf16.msra.mxu0 %v561
      %584 = vmatprep.subr.bf16.mxu0 0
      %585 = vmatpush1.bf16.msra.mxu0 %v560
      %586 = vmatprep.subr.bf16.mxu0 0
      %587 = vmatpush1.bf16.msra.mxu0 %v559
      %588 = vmatprep.subr.bf16.mxu0 0
      %589 = vmatpush1.bf16.msra.mxu0 %v558
      %590 = vmatprep.subr.bf16.mxu0 0
      %591 = vmatpush2.bf16.msra.mxu0 0
      %592 = vmatprep.subr.bf16.mxu0 0
      %593 = vmatpush2.bf16.msra.mxu0 0
      %594 = vmatprep.subr.bf16.mxu0 0
      %595 = vmatpush2.bf16.msra.mxu0 0
      %596 = vmatprep.subr.bf16.mxu0 0
      %597 = vmatpush2.bf16.msra.mxu0 0
      %598 = vmatprep.subr.bf16.mxu0 0
      %599 = vmatpush2.bf16.msra.mxu0 0
      %600 = vmatprep.subr.bf16.mxu0 0
      %601 = vmatpush2.bf16.msra.mxu0 0
      %602 = vmatprep.subr.bf16.mxu0 0
      %603 = vmatpush2.bf16.msra.mxu0 0
      %604 = vmatprep.subr.bf16.mxu0 0
      %605 = vmatpush2.bf16.msra.mxu0 0
      %606 = vmatprep.mubr.bf16.mxu0 0
      %607 = vmatmul.mubr.bf16.gmra.mxu0 %v522
      %v608 = vpop.f32.mrf.mxu0
      %v609 = vadd.f32 0.0, %v608
      %v610 = vpop.f32.mrf.mxu0
      %v611 = vpop.f32.mrf.mxu0
      %v612 = vadd.f32 0.0, %v611
      %v613 = vpop.f32.mrf.mxu0
      %614 = vmatprep.mubr.bf16.mxu0 0
      %615 = vmatmul.mubr.bf16.gmra.mxu0 %v523
      %v616 = vpop.f32.mrf.mxu0
      %v617 = vadd.f32 0.0, %v616
      %v618 = vpop.f32.mrf.mxu0
      %v619 = vpop.f32.mrf.mxu0
      %v620 = vadd.f32 0.0, %v619
      %v621 = vpop.f32.mrf.mxu0
      %622 = vdwg.mxu0
      %v623 = vld [vmem:[%s4] sm:$0x1]
      %v625 = vlaneseq
      %v626 = vshrl.u32 %v625, 7
      %v627 = vsub.s32 0, %v626
      %v628 = vrot.slane %v623, %v627
      %v630 = vadd.f32 %v609, %v628
      %v631 = vadd.f32 %v612, %v628
      %v632 = vand.u32 2147483647, %v630
      %v633 = vand.u32 2147483647, %v631
      %v634 = vsub.f32 0.0, %v632
      %v635 = vsub.f32 0.0, %v633
      %v636 = vmul.f32 %v634, 1.442695
      %v637 = vpow.pop %v636
      %v638 = vmul.f32 %v635, 1.442695
      %v639 = vpow.pop %v638
      %v640 = vadd.f32 %v637, 1.0
      %v641 = vadd.f32 %v639, 1.0
      %v642 = vrcp.pop %v640
      %v643 = vrcp.pop %v641
      %vm644 = vcmp.ge.f32.partialorder %v630, 0.0
      %vm645 = vcmp.ge.f32.partialorder %v631, 0.0
      %v646 = vmul.f32 %v637, %v642
      %v647 = vmul.f32 %v639, %v643
      %v648 = vsel %vm644, %v642, %v646
      %v649 = vsel %vm645, %v643, %v647
      %v650 = vmax.f32 %v630, 0.0
      %v651 = vmax.f32 %v631, 0.0
      %v652 = vadd.f32 %v637, 1.0
      %v653 = vlog2.pop %v652
      %v654 = vmul.f32 %v653, 0.6931472
      %v655 = vmul.f32 -0.5, %v637
      %v656 = vadd.f32 %v655, 1.0
      %v657 = vmul.f32 %v656, %v637
      %v658 = vand.u32 2147483647, %v637
      %vm659 = vcmp.lt.f32.partialorder %v658, 0.0004427343
      %v660 = vsel %vm659, %v657, %v654
      %v661 = vadd.f32 %v639, 1.0
      %v662 = vlog2.pop %v661
      %v663 = vmul.f32 %v662, 0.6931472
      %v664 = vmul.f32 -0.5, %v639
      %v665 = vadd.f32 %v664, 1.0
      %v666 = vmul.f32 %v665, %v639
      %v667 = vand.u32 2147483647, %v639
      %vm668 = vcmp.lt.f32.partialorder %v667, 0.0004427343
      %v669 = vsel %vm668, %v666, %v663
      %v670 = vadd.f32 %v650, %v660
      %v671 = vadd.f32 %v651, %v669
      %v672 = vpack.c.bf16 %v671, %v670
      %v674 = vunpack.c.l.b16 %v672
      %v675 = vunpack.c.h.b16 %v672
      %v676 = vpack.c.b16 %v674, %v674
      %v677 = vpack.c.b16 %v675, %v675
      %680 = vst [vmem:[#allocation2] sm:$0xf] %v676
      %681 = vst [vmem:[#allocation2 + $0x4] sm:$0xf] %v677
      %v682 = vmul.f32 %v617, %v648
      %v683 = vmul.f32 %v620, %v649
      %v684 = vpack.c.bf16 %v683, %v682
      %v686 = vunpack.c.l.b16 %v684
      %v687 = vunpack.c.h.b16 %v684
      %v688 = vpack.c.b16 %v686, %v686
      %v689 = vpack.c.b16 %v687, %v687
      %692 = vst [vmem:[#allocation2 + $0x8] sm:$0xf] %v688
      %693 = vst [vmem:[#allocation2 + $0xc] sm:$0xf] %v689
      %v694 = vld [vmem:[#allocation2] sm:$0xf]
      %v695 = vld [vmem:[#allocation2 + $0x4] sm:$0xf]
      %v696 = vld [vmem:[#allocation2 + $0x8] sm:$0xf]
      %v697 = vld [vmem:[#allocation2 + $0xc] sm:$0xf]
      %v698 = vld [vmem:[%s5] sm:$0xf]
      %v699 = vld [vmem:[%s5 + $0x4] sm:$0xf]
      %v700 = vld [vmem:[%s5 + $0x8] sm:$0xf]
      %v701 = vld [vmem:[%s5 + $0xc] sm:$0xf]
      %v702 = vld [vmem:[%s5 + $0x10] sm:$0xf]
      %v703 = vld [vmem:[%s5 + $0x14] sm:$0xf]
      %v704 = vld [vmem:[%s5 + $0x18] sm:$0xf]
      %v705 = vld [vmem:[%s5 + $0x1c] sm:$0xf]
      %v706 = vld [vmem:[%s5 + $0x20] sm:$0xf]
      %v707 = vld [vmem:[%s5 + $0x24] sm:$0xf]
      %v708 = vld [vmem:[%s5 + $0x28] sm:$0xf]
      %v709 = vld [vmem:[%s5 + $0x2c] sm:$0xf]
      %v710 = vld [vmem:[%s5 + $0x30] sm:$0xf]
      %v711 = vld [vmem:[%s5 + $0x34] sm:$0xf]
      %v712 = vld [vmem:[%s5 + $0x38] sm:$0xf]
      %v713 = vld [vmem:[%s5 + $0x3c] sm:$0xf]
      %v718 = vunpack.c.l.b16 %v694
      %v719 = vunpack.c.l.b16 %v695
      %v720 = vunpack.c.l.b16 %v696
      %v721 = vunpack.c.l.b16 %v697
      %v722 = vpack.c.b16 %v719, %v718
      %v723 = vpack.c.b16 %v721, %v720
      %v742 = vunpack.c.l.b16 %v698
      %v743 = vunpack.c.l.b16 %v699
      %v744 = vunpack.c.l.b16 %v700
      %v745 = vunpack.c.l.b16 %v701
      %v746 = vunpack.c.l.b16 %v702
      %v747 = vunpack.c.l.b16 %v703
      %v748 = vunpack.c.l.b16 %v704
      %v749 = vunpack.c.l.b16 %v705
      %v750 = vunpack.c.l.b16 %v706
      %v751 = vunpack.c.l.b16 %v707
      %v752 = vunpack.c.l.b16 %v708
      %v753 = vunpack.c.l.b16 %v709
      %v754 = vunpack.c.l.b16 %v710
      %v755 = vunpack.c.l.b16 %v711
      %v756 = vunpack.c.l.b16 %v712
      %v757 = vunpack.c.l.b16 %v713
      %v758 = vpack.c.b16 %v743, %v742
      %v759 = vpack.c.b16 %v745, %v744
      %v760 = vpack.c.b16 %v747, %v746
      %v761 = vpack.c.b16 %v749, %v748
      %v762 = vpack.c.b16 %v751, %v750
      %v763 = vpack.c.b16 %v753, %v752
      %v764 = vpack.c.b16 %v755, %v754
      %v765 = vpack.c.b16 %v757, %v756
      %774 = vmatprep.subr.bf16.mxu0 0
      %775 = vmatpush1.bf16.msra.mxu0 %v765
      %776 = vmatprep.subr.bf16.mxu0 0
      %777 = vmatpush1.bf16.msra.mxu0 %v764
      %778 = vmatprep.subr.bf16.mxu0 0
      %779 = vmatpush1.bf16.msra.mxu0 %v763
      %780 = vmatprep.subr.bf16.mxu0 0
      %781 = vmatpush1.bf16.msra.mxu0 %v762
      %782 = vmatprep.subr.bf16.mxu0 0
      %783 = vmatpush1.bf16.msra.mxu0 %v761
      %784 = vmatprep.subr.bf16.mxu0 0
      %785 = vmatpush1.bf16.msra.mxu0 %v760
      %786 = vmatprep.subr.bf16.mxu0 0
      %787 = vmatpush1.bf16.msra.mxu0 %v759
      %788 = vmatprep.subr.bf16.mxu0 0
      %789 = vmatpush1.bf16.msra.mxu0 %v758
      %790 = vmatprep.subr.bf16.mxu0 0
      %791 = vmatpush2.bf16.msra.mxu0 0
      %792 = vmatprep.subr.bf16.mxu0 0
      %793 = vmatpush2.bf16.msra.mxu0 0
      %794 = vmatprep.subr.bf16.mxu0 0
      %795 = vmatpush2.bf16.msra.mxu0 0
      %796 = vmatprep.subr.bf16.mxu0 0
      %797 = vmatpush2.bf16.msra.mxu0 0
      %798 = vmatprep.subr.bf16.mxu0 0
      %799 = vmatpush2.bf16.msra.mxu0 0
      %800 = vmatprep.subr.bf16.mxu0 0
      %801 = vmatpush2.bf16.msra.mxu0 0
      %802 = vmatprep.subr.bf16.mxu0 0
      %803 = vmatpush2.bf16.msra.mxu0 0
      %804 = vmatprep.subr.bf16.mxu0 0
      %805 = vmatpush2.bf16.msra.mxu0 0
      %806 = vmatprep.mubr.bf16.mxu0 0
      %807 = vmatmul.mubr.bf16.gmra.mxu0 %v722
      %v808 = vpop.f32.mrf.mxu0
      %v809 = vadd.f32 0.0, %v808
      %v810 = vpop.f32.mrf.mxu0
      %v811 = vpop.f32.mrf.mxu0
      %v812 = vadd.f32 0.0, %v811
      %v813 = vpop.f32.mrf.mxu0
      %814 = vmatprep.mubr.bf16.mxu0 0
      %815 = vmatmul.mubr.bf16.gmra.mxu0 %v723
      %v816 = vpop.f32.mrf.mxu0
      %v817 = vadd.f32 0.0, %v816
      %v818 = vpop.f32.mrf.mxu0
      %v819 = vpop.f32.mrf.mxu0
      %v820 = vadd.f32 0.0, %v819
      %v821 = vpop.f32.mrf.mxu0
      %822 = vdwg.mxu0
      %v823 = vld [vmem:[%s6] sm:$0x1]
      %v825 = vlaneseq
      %v826 = vshrl.u32 %v825, 7
      %v827 = vsub.s32 0, %v826
      %v828 = vrot.slane %v823, %v827
      %v830 = vadd.f32 %v809, %v828
      %v831 = vadd.f32 %v812, %v828
      %v832 = vand.u32 2147483647, %v830
      %v833 = vand.u32 2147483647, %v831
      %v834 = vsub.f32 0.0, %v832
      %v835 = vsub.f32 0.0, %v833
      %v836 = vmul.f32 %v834, 1.442695
      %v837 = vpow.pop %v836
      %v838 = vmul.f32 %v835, 1.442695
      %v839 = vpow.pop %v838
      %v840 = vadd.f32 %v837, 1.0
      %v841 = vadd.f32 %v839, 1.0
      %v842 = vrcp.pop %v840
      %v843 = vrcp.pop %v841
      %vm844 = vcmp.ge.f32.partialorder %v830, 0.0
      %vm845 = vcmp.ge.f32.partialorder %v831, 0.0
      %v846 = vmul.f32 %v837, %v842
      %v847 = vmul.f32 %v839, %v843
      %v848 = vsel %vm844, %v842, %v846
      %v849 = vsel %vm845, %v843, %v847
      %v850 = vmax.f32 %v830, 0.0
      %v851 = vmax.f32 %v831, 0.0
      %v852 = vadd.f32 %v837, 1.0
      %v853 = vlog2.pop %v852
      %v854 = vmul.f32 %v853, 0.6931472
      %v855 = vmul.f32 -0.5, %v837
      %v856 = vadd.f32 %v855, 1.0
      %v857 = vmul.f32 %v856, %v837
      %v858 = vand.u32 2147483647, %v837
      %vm859 = vcmp.lt.f32.partialorder %v858, 0.0004427343
      %v860 = vsel %vm859, %v857, %v854
      %v861 = vadd.f32 %v839, 1.0
      %v862 = vlog2.pop %v861
      %v863 = vmul.f32 %v862, 0.6931472
      %v864 = vmul.f32 -0.5, %v839
      %v865 = vadd.f32 %v864, 1.0
      %v866 = vmul.f32 %v865, %v839
      %v867 = vand.u32 2147483647, %v839
      %vm868 = vcmp.lt.f32.partialorder %v867, 0.0004427343
      %v869 = vsel %vm868, %v866, %v863
      %v870 = vadd.f32 %v850, %v860
      %v871 = vadd.f32 %v851, %v869
      %v872 = vpack.c.bf16 %v871, %v870
      %v874 = vunpack.c.l.b16 %v872
      %v875 = vunpack.c.h.b16 %v872
      %v876 = vpack.c.b16 %v874, %v874
      %v877 = vpack.c.b16 %v875, %v875
      %880 = vst [vmem:[#allocation2] sm:$0xf] %v876
      %881 = vst [vmem:[#allocation2 + $0x4] sm:$0xf] %v877
      %v882 = vmul.f32 %v817, %v848
      %v883 = vmul.f32 %v820, %v849
      %v884 = vpack.c.bf16 %v883, %v882
      %v886 = vunpack.c.l.b16 %v884
      %v887 = vunpack.c.h.b16 %v884
      %v888 = vpack.c.b16 %v886, %v886
      %v889 = vpack.c.b16 %v887, %v887
      %892 = vst [vmem:[#allocation2 + $0x8] sm:$0xf] %v888
      %893 = vst [vmem:[#allocation2 + $0xc] sm:$0xf] %v889
      %v894 = vld [vmem:[#allocation2] sm:$0xf]
      %v895 = vld [vmem:[#allocation2 + $0x4] sm:$0xf]
      %v896 = vld [vmem:[#allocation2 + $0x8] sm:$0xf]
      %v897 = vld [vmem:[#allocation2 + $0xc] sm:$0xf]
      %v898 = vld [vmem:[%s7] sm:$0xf]
      %v899 = vld [vmem:[%s7 + $0x4] sm:$0xf]
      %v900 = vld [vmem:[%s7 + $0x8] sm:$0xf]
      %v901 = vld [vmem:[%s7 + $0xc] sm:$0xf]
      %v902 = vld [vmem:[%s7 + $0x10] sm:$0xf]
      %v903 = vld [vmem:[%s7 + $0x14] sm:$0xf]
      %v904 = vld [vmem:[%s7 + $0x18] sm:$0xf]
      %v905 = vld [vmem:[%s7 + $0x1c] sm:$0xf]
      %v906 = vld [vmem:[%s7 + $0x20] sm:$0xf]
      %v907 = vld [vmem:[%s7 + $0x24] sm:$0xf]
      %v908 = vld [vmem:[%s7 + $0x28] sm:$0xf]
      %v909 = vld [vmem:[%s7 + $0x2c] sm:$0xf]
      %v910 = vld [vmem:[%s7 + $0x30] sm:$0xf]
      %v911 = vld [vmem:[%s7 + $0x34] sm:$0xf]
      %v912 = vld [vmem:[%s7 + $0x38] sm:$0xf]
      %v913 = vld [vmem:[%s7 + $0x3c] sm:$0xf]
      %v918 = vunpack.c.l.b16 %v894
      %v919 = vunpack.c.l.b16 %v895
      %v920 = vunpack.c.l.b16 %v896
      %v921 = vunpack.c.l.b16 %v897
      %v922 = vpack.c.b16 %v919, %v918
      %v923 = vpack.c.b16 %v921, %v920
      %v942 = vunpack.c.l.b16 %v898
      %v943 = vunpack.c.l.b16 %v899
      %v944 = vunpack.c.l.b16 %v900
      %v945 = vunpack.c.l.b16 %v901
      %v946 = vunpack.c.l.b16 %v902
      %v947 = vunpack.c.l.b16 %v903
      %v948 = vunpack.c.l.b16 %v904
      %v949 = vunpack.c.l.b16 %v905
      %v950 = vunpack.c.l.b16 %v906
      %v951 = vunpack.c.l.b16 %v907
      %v952 = vunpack.c.l.b16 %v908
      %v953 = vunpack.c.l.b16 %v909
      %v954 = vunpack.c.l.b16 %v910
      %v955 = vunpack.c.l.b16 %v911
      %v956 = vunpack.c.l.b16 %v912
      %v957 = vunpack.c.l.b16 %v913
      %v958 = vpack.c.b16 %v943, %v942
      %v959 = vpack.c.b16 %v945, %v944
      %v960 = vpack.c.b16 %v947, %v946
      %v961 = vpack.c.b16 %v949, %v948
      %v962 = vpack.c.b16 %v951, %v950
      %v963 = vpack.c.b16 %v953, %v952
      %v964 = vpack.c.b16 %v955, %v954
      %v965 = vpack.c.b16 %v957, %v956
      %974 = vmatprep.subr.bf16.mxu0 0
      %975 = vmatpush1.bf16.msra.mxu0 %v965
      %976 = vmatprep.subr.bf16.mxu0 0
      %977 = vmatpush1.bf16.msra.mxu0 %v964
      %978 = vmatprep.subr.bf16.mxu0 0
      %979 = vmatpush1.bf16.msra.mxu0 %v963
      %980 = vmatprep.subr.bf16.mxu0 0
      %981 = vmatpush1.bf16.msra.mxu0 %v962
      %982 = vmatprep.subr.bf16.mxu0 0
      %983 = vmatpush1.bf16.msra.mxu0 %v961
      %984 = vmatprep.subr.bf16.mxu0 0
      %985 = vmatpush1.bf16.msra.mxu0 %v960
      %986 = vmatprep.subr.bf16.mxu0 0
      %987 = vmatpush1.bf16.msra.mxu0 %v959
      %988 = vmatprep.subr.bf16.mxu0 0
      %989 = vmatpush1.bf16.msra.mxu0 %v958
      %990 = vmatprep.subr.bf16.mxu0 0
      %991 = vmatpush2.bf16.msra.mxu0 0
      %992 = vmatprep.subr.bf16.mxu0 0
      %993 = vmatpush2.bf16.msra.mxu0 0
      %994 = vmatprep.subr.bf16.mxu0 0
      %995 = vmatpush2.bf16.msra.mxu0 0
      %996 = vmatprep.subr.bf16.mxu0 0
      %997 = vmatpush2.bf16.msra.mxu0 0
      %998 = vmatprep.subr.bf16.mxu0 0
      %999 = vmatpush2.bf16.msra.mxu0 0
      %1000 = vmatprep.subr.bf16.mxu0 0
      %1001 = vmatpush2.bf16.msra.mxu0 0
      %1002 = vmatprep.subr.bf16.mxu0 0
      %1003 = vmatpush2.bf16.msra.mxu0 0
      %1004 = vmatprep.subr.bf16.mxu0 0
      %1005 = vmatpush2.bf16.msra.mxu0 0
      %1006 = vmatprep.mubr.bf16.mxu0 0
      %1007 = vmatmul.mubr.bf16.gmra.mxu0 %v922
      %v1008 = vpop.f32.mrf.mxu0
      %v1009 = vadd.f32 0.0, %v1008
      %v1010 = vpop.f32.mrf.mxu0
      %v1011 = vpop.f32.mrf.mxu0
      %v1012 = vadd.f32 0.0, %v1011
      %v1013 = vpop.f32.mrf.mxu0
      %1014 = vmatprep.mubr.bf16.mxu0 0
      %1015 = vmatmul.mubr.bf16.gmra.mxu0 %v923
      %v1016 = vpop.f32.mrf.mxu0
      %v1017 = vadd.f32 0.0, %v1016
      %v1018 = vpop.f32.mrf.mxu0
      %v1019 = vpop.f32.mrf.mxu0
      %v1020 = vadd.f32 0.0, %v1019
      %v1021 = vpop.f32.mrf.mxu0
      %1022 = vdwg.mxu0
      %v1023 = vld [vmem:[%s8] sm:$0x1]
      %v1025 = vlaneseq
      %v1026 = vshrl.u32 %v1025, 7
      %v1027 = vsub.s32 0, %v1026
      %v1028 = vrot.slane %v1023, %v1027
      %v1030 = vadd.f32 %v1009, %v1028
      %v1031 = vadd.f32 %v1012, %v1028
      %vm1032 = vcmask 64512
      %1033 = vst.msk [vmem:[%s334] sm:$0xff] %vm1032, %v1030
      %1034 = vst.msk [vmem:[%s334 + $0x8] sm:$0xff] %vm1032, %v1031
      %1035 = vst.msk [vmem:[%s334 + $0x10] sm:$0xff] %vm1032, %v1017
      %1036 = vst.msk [vmem:[%s334 + $0x18] sm:$0xff] %vm1032, %v1020
      %s1037 = smul.u32 4, %s20
      %p1038 = scmp.lt.s32.totalorder %s1037, 15
      %s1039 = scalar_select %p1038, %s1037, 15
      %s1040 = smul.addr %s1039, 8
      %s1041 = scalar_lea.vmem %s9, %s1040
      // Predicated region
      $region57: #{jnet_forward.1} parent=55 // pred_check
        %p1042 = pneg %p232
      $region58: #{jnet_forward.1} parent=55 // pred_check_branch
        %1044 = sbr.rel (%p1042) target = $region60
      $region59: #{jnet_forward.1} parent=55 // pred_region
        %s1045 = smul.u32 4, %s20
      $region60: #{jnet_forward.1} parent=55 // pred_fallthru
        _
    $region56: #{jnet_forward.1} parent=5 // pred_fallthru
      _
    %p1046 = scmp.le.s32.totalorder 2, %s15
    // Predicated region
    $region61: #{jnet_forward.1} parent=5 // pred_check
      %p1047 = pneg %p1046
    $region62: #{jnet_forward.1} parent=5 // pred_check_branch
      %1049 = sbr.rel (%p1047) target = $region64
    $region63: #{jnet_forward.1} parent=5 // pred_region
      %s1050 = ssub.s32 %s15, 2
      // Predicated region
      $region65: #{jnet_forward.1} parent=63 // pred_check
        %p1051 = pneg %p238
      $region66: #{jnet_forward.1} parent=63 // pred_check_branch
        %1053 = sbr.rel (%p1051) target = $region68
      $region67: #{jnet_forward.1} parent=63 // pred_region
        %s1054 = smul.u32 4, %s21
        %p1055 = scmp.lt.s32.totalorder %s1054, 15
        %s1056 = scalar_select %p1055, %s1054, 15
        %s1057 = smul.addr %s1056, 8
        %s1058 = scalar_lea.vmem %s9, %s1057
      $region68: #{jnet_forward.1} parent=63 // pred_fallthru
        _
    $region64: #{jnet_forward.1} parent=5 // pred_fallthru
      _
  $region6: #{jnet_forward.1} parent=0 // loop_footer
    %s19 = sadd.s32 1, %s15
  $region7: #{jnet_forward.1} parent=0 // loop_footer_branch
    %14 = sbr.rel target = $region3
  $region8: #{jnet_forward.1} parent=0 // loop_exit
    _

</llo_original>
